<compile_context>
chip_gen: v7x
topology: tpu7x:2x2x1
jax: 0.10.0
libtpu: 0.0.40
codegen_flags: <defaults>
</compile_context>

<pallas_src>
import functools

import jax
import jax.numpy as jnp
from jax.experimental import pallas as pl
from jax.experimental.pallas import tpu as pltpu

PAIRWISE_EPS = 1e-6  # eps inside F.pairwise_distance (PyTorch default)


def _mse_pd_kernel(y1_ref, y2_ref, y_ref, out_ref, *, n_rows, tile, pack, d_orig):
    """One grid step over a (tile, width) slab of rows.

    Packed path (pack > 1): each kernel row holds `pack` original samples of
    `d_orig` features, contiguous across the 128 lanes (lane-dense).
    Unpacked path (pack == 1): one original sample per kernel row, width = D.

    y1_ref / y2_ref : (tile, width)  native dtype
    y_ref           : (tile, pack)   targets, packed the same way
    out_ref         : (1, 8, 128)    f32 VMEM, filled with this tile's partial SSE
    """
    pid = pl.program_id(0)

    y1 = y1_ref[...].astype(jnp.float32)
    y2 = y2_ref[...].astype(jnp.float32)
    yt = y_ref[...].astype(jnp.float32)                 # (tile, pack)

    diff = y1 - y2 + PAIRWISE_EPS                       # lane-dense VPU work
    sq = diff * diff

    # Mask for rows of the (possibly padded) last tile.
    row_ids = jax.lax.broadcasted_iota(jnp.int32, (sq.shape[0], 1), 0) + pid * tile
    valid = row_ids < n_rows                            # (tile, 1)

    partial = jnp.float32(0.0)
    if pack == 1:
        row_sumsq = jnp.sum(sq, axis=-1, keepdims=True)          # (tile, 1)
        err = jnp.sqrt(row_sumsq) - yt                           # pairwise dist - target
        partial = partial + jnp.sum(jnp.where(valid, err * err, 0.0))
    else:
        # Segmented (per-original-row) reduce over groups of d_orig lanes:
        # static lane slices + narrow reduces -> exact f32, one pass over data.
        for g in range(pack):                                    # static unroll, pack <= 8
            rs = jnp.sum(sq[:, g * d_orig:(g + 1) * d_orig], axis=-1, keepdims=True)
            err = jnp.sqrt(rs) - yt[:, g:g + 1]                  # (tile, 1)
            partial = partial + jnp.sum(jnp.where(valid, err * err, 0.0))

    # Lane-dense (8,128) partial block (unmasked vst); reduced in the wrapper.
    out_ref[...] = jnp.full((1, 8, 128), partial, dtype=jnp.float32)


def _pick_tile(rows, width, itemsize):
    # ~4 MiB per input tile; 2 big inputs x 2 pipeline buffers -> ~16 MiB of
    # pipelined VMEM, within the 32 MiB scoped limit requested below
    # (and well under physical VMEM on v5e/v6e/v7x).
    if rows <= 8:
        return rows                                     # one full-extent block
    budget_rows = (4 * 1024 * 1024) // max(1, width * itemsize)
    tb = min(rows, budget_rows, 2048)
    tb = max(8, (tb // 8) * 8)                          # sublane-aligned
    return tb


def mse_pairwise_loss(y1, y2, y):
    """y1, y2: (B, D); y: (B,). Returns scalar f32:
       mean_i (||y1_i - y2_i + 1e-6||_2 - y_i)^2  (matches the PyTorch module)."""
    B, D = y1.shape
    itemsize = jnp.dtype(y1.dtype).itemsize

    # Lane-dense packing for small feature dims: view (B, D) as (B/pack, 128).
    pack = 1
    if D < 128 and 128 % D == 0 and (128 // D) <= 8 and B % (128 // D) == 0:
        pack = 128 // D
    rows = B // pack
    width = D * pack                                    # == 128 on the packed path

    y1p = y1.reshape(rows, width)                       # free row-major views
    y2p = y2.reshape(rows, width)
    yp = y.reshape(rows, pack)

    tb = _pick_tile(rows, width, itemsize)
    num_tiles = pl.cdiv(rows, tb)

    cost = pl.CostEstimate(
        flops=int(5 * B * D + 6 * B),
        transcendentals=int(B),
        bytes_accessed=int(2 * B * D * itemsize
                           + B * jnp.dtype(y.dtype).itemsize
                           + num_tiles * 8 * 128 * 4),
    )

    kernel = functools.partial(_mse_pd_kernel,
                               n_rows=rows, tile=tb, pack=pack, d_orig=D)

    partials = pl.pallas_call(
        kernel,
        out_shape=jax.ShapeDtypeStruct((num_tiles, 8, 128), jnp.float32),
        grid_spec=pltpu.PrefetchScalarGridSpec(
            num_scalar_prefetch=0,
            grid=(num_tiles,),
            in_specs=[
                pl.BlockSpec((tb, width), lambda i: (i, 0)),
                pl.BlockSpec((tb, width), lambda i: (i, 0)),
                pl.BlockSpec((tb, pack), lambda i: (i, 0)),
            ],
            out_specs=pl.BlockSpec((1, 8, 128), lambda i: (i, 0, 0)),
        ),
        compiler_params=pltpu.CompilerParams(
            dimension_semantics=("parallel",),          # independent tiles -> both TCs on v7x
            vmem_limit_bytes=32 * 1024 * 1024,
        ),
        cost_estimate=cost,
    )(y1p, y2p, yp)

    # Tiny finalize in the wrapper: sum the per-tile partials and take the mean.
    return jnp.sum(partials[:, 0, 0]) * jnp.float32(1.0 / B)


def mse_pairwise_loss_ref(y1, y2, y):
    # Pure-JAX reference mirroring the PyTorch module.
    d = y1.astype(jnp.float32) - y2.astype(jnp.float32) + PAIRWISE_EPS
    yhat = jnp.sqrt(jnp.sum(d * d, axis=-1))
    return jnp.mean((yhat - y.astype(jnp.float32)) ** 2)


if __name__ == "__main__":
    # Case 1: small shapes consistent with the module (packed path, D=32).
    k1, k2, k3 = jax.random.split(jax.random.PRNGKey(0), 3)
    B, D = 8, 32
    y1 = jax.random.normal(k1, (B, D), dtype=jnp.float32)
    y2 = jax.random.normal(k2, (B, D), dtype=jnp.float32)
    y = jax.random.normal(k3, (B,), dtype=jnp.float32)
    loss = jax.block_until_ready(mse_pairwise_loss(y1, y2, y))
    ref = jax.block_until_ready(mse_pairwise_loss_ref(y1, y2, y))
    assert jnp.allclose(loss, ref, rtol=1e-5, atol=1e-5), (loss, ref)

    # Case 2: ragged batch, packed path with D=64 (exercises grid + edge masking).
    k4, k5, k6 = jax.random.split(jax.random.PRNGKey(0), 3)
    B2, D2 = 300, 64
    a1 = jax.random.normal(k4, (B2, D2), dtype=jnp.float32)
    a2 = jax.random.normal(k5, (B2, D2), dtype=jnp.float32)
    t = jax.random.normal(k6, (B2,), dtype=jnp.float32)
    loss2 = jax.block_until_ready(mse_pairwise_loss(a1, a2, t))
    ref2 = jax.block_until_ready(mse_pairwise_loss_ref(a1, a2, t))
    assert jnp.allclose(loss2, ref2, rtol=1e-5, atol=1e-4), (loss2, ref2)

    # Case 3: D = 128 (already lane-dense -> unpacked path).
    k7, k8, k9 = jax.random.split(jax.random.PRNGKey(0), 3)
    B3, D3 = 16, 128
    b1 = jax.random.normal(k7, (B3, D3), dtype=jnp.float32)
    b2 = jax.random.normal(k8, (B3, D3), dtype=jnp.float32)
    t3 = jax.random.normal(k9, (B3,), dtype=jnp.float32)
    loss3 = jax.block_until_ready(mse_pairwise_loss(b1, b2, t3))
    ref3 = jax.block_until_ready(mse_pairwise_loss_ref(b1, b2, t3))
    assert jnp.allclose(loss3, ref3, rtol=1e-5, atol=1e-5), (loss3, ref3)

    print("KERNEL_OK")
</pallas_src>

<mosaic_0001>
module attributes {stable_mosaic.version = 11 : i64} {
  func.func @_mse_pd_kernel(%arg0: i32, %arg1: memref<2x128xf32, #tpu.memory_space<vmem>>, %arg2: memref<2x128xf32, #tpu.memory_space<vmem>>, %arg3: memref<2x4xf32, #tpu.memory_space<vmem>>, %arg4: memref<1x8x128xf32, #tpu.memory_space<vmem>>) attributes {dimension_semantics = [#tpu.dimension_semantics<parallel>], iteration_bounds = array<i64: 1>, scalar_prefetch = 0 : i64, scratch_operands = 0 : i64, tpu.core_type = #tpu.core_type<tc>, window_params = [{transform_indices = @transform_0, window_bounds = array<i64: 2, 128>}, {transform_indices = @transform_1, window_bounds = array<i64: 2, 128>}, {transform_indices = @transform_2, window_bounds = array<i64: 2, 4>}, {transform_indices = @transform_3, window_bounds = array<i64: 1, 8, 128>}]} {
    %c0 = arith.constant 0 : index
    %c0_0 = arith.constant 0 : index
    %0 = vector.load %arg1[%c0, %c0_0] : memref<2x128xf32, #tpu.memory_space<vmem>>, vector<2x128xf32>
    %c0_1 = arith.constant 0 : index
    %c0_2 = arith.constant 0 : index
    %1 = vector.load %arg2[%c0_1, %c0_2] : memref<2x128xf32, #tpu.memory_space<vmem>>, vector<2x128xf32>
    %c0_3 = arith.constant 0 : index
    %c0_4 = arith.constant 0 : index
    %2 = vector.load %arg3[%c0_3, %c0_4] : memref<2x4xf32, #tpu.memory_space<vmem>>, vector<2x4xf32>
    %3 = arith.subf %0, %1 : vector<2x128xf32>
    %cst = arith.constant 9.99999997E-7 : f32
    %4 = vector.broadcast %cst : f32 to vector<2x128xf32>
    %5 = arith.addf %3, %4 : vector<2x128xf32>
    %6 = arith.mulf %5, %5 : vector<2x128xf32>
    %7 = tpu.iota {dimensions = array<i32: 0>} : vector<2x1xi32>
    %c2_i32 = arith.constant 2 : i32
    %8 = arith.muli %arg0, %c2_i32 : i32
    %9 = vector.broadcast %8 : i32 to vector<2x1xi32>
    %10 = arith.addi %7, %9 : vector<2x1xi32>
    %c2_i32_5 = arith.constant 2 : i32
    %11 = vector.broadcast %c2_i32_5 : i32 to vector<2x1xi32>
    %12 = arith.cmpi slt, %10, %11 : vector<2x1xi32>
    %13 = vector.extract_strided_slice %6 {offsets = [0, 0], sizes = [2, 32], strides = [1, 1]} : vector<2x128xf32> to vector<2x32xf32>
    %cst_6 = arith.constant dense<0.000000e+00> : vector<2xf32>
    %14 = vector.multi_reduction <add>, %13, %cst_6 [1] : vector<2x32xf32> to vector<2xf32>
    %15 = vector.shape_cast %14 : vector<2xf32> to vector<2x1xf32>
    %16 = math.sqrt %15 : vector<2x1xf32>
    %17 = vector.extract_strided_slice %2 {offsets = [0, 0], sizes = [2, 1], strides = [1, 1]} : vector<2x4xf32> to vector<2x1xf32>
    %18 = arith.subf %16, %17 : vector<2x1xf32>
    %19 = arith.mulf %18, %18 : vector<2x1xf32>
    %cst_7 = arith.constant 0.000000e+00 : f32
    %20 = vector.broadcast %cst_7 : f32 to vector<2x1xf32>
    %21 = arith.select %12, %19, %20 : vector<2x1xi1>, vector<2x1xf32>
    %22 = vector.shape_cast %21 : vector<2x1xf32> to vector<1x2x1xf32>
    %cst_8 = arith.constant dense<0.000000e+00> : vector<1xf32>
    %23 = vector.multi_reduction <add>, %22, %cst_8 [1, 2] : vector<1x2x1xf32> to vector<1xf32>
    %24 = vector.shape_cast %23 : vector<1xf32> to vector<1x1x1xf32>
    %25 = vector.extract %24[0, 0, 0] : f32 from vector<1x1x1xf32>
    %cst_9 = arith.constant 0.000000e+00 : f32
    %26 = arith.addf %cst_9, %25 : f32
    %27 = vector.extract_strided_slice %6 {offsets = [0, 32], sizes = [2, 32], strides = [1, 1]} : vector<2x128xf32> to vector<2x32xf32>
    %cst_10 = arith.constant dense<0.000000e+00> : vector<2xf32>
    %28 = vector.multi_reduction <add>, %27, %cst_10 [1] : vector<2x32xf32> to vector<2xf32>
    %29 = vector.shape_cast %28 : vector<2xf32> to vector<2x1xf32>
    %30 = math.sqrt %29 : vector<2x1xf32>
    %31 = vector.extract_strided_slice %2 {offsets = [0, 1], sizes = [2, 1], strides = [1, 1]} : vector<2x4xf32> to vector<2x1xf32>
    %32 = arith.subf %30, %31 : vector<2x1xf32>
    %33 = arith.mulf %32, %32 : vector<2x1xf32>
    %cst_11 = arith.constant 0.000000e+00 : f32
    %34 = vector.broadcast %cst_11 : f32 to vector<2x1xf32>
    %35 = arith.select %12, %33, %34 : vector<2x1xi1>, vector<2x1xf32>
    %36 = vector.shape_cast %35 : vector<2x1xf32> to vector<1x2x1xf32>
    %cst_12 = arith.constant dense<0.000000e+00> : vector<1xf32>
    %37 = vector.multi_reduction <add>, %36, %cst_12 [1, 2] : vector<1x2x1xf32> to vector<1xf32>
    %38 = vector.shape_cast %37 : vector<1xf32> to vector<1x1x1xf32>
    %39 = vector.extract %38[0, 0, 0] : f32 from vector<1x1x1xf32>
    %40 = arith.addf %26, %39 : f32
    %41 = vector.extract_strided_slice %6 {offsets = [0, 64], sizes = [2, 32], strides = [1, 1]} : vector<2x128xf32> to vector<2x32xf32>
    %cst_13 = arith.constant dense<0.000000e+00> : vector<2xf32>
    %42 = vector.multi_reduction <add>, %41, %cst_13 [1] : vector<2x32xf32> to vector<2xf32>
    %43 = vector.shape_cast %42 : vector<2xf32> to vector<2x1xf32>
    %44 = math.sqrt %43 : vector<2x1xf32>
    %45 = vector.extract_strided_slice %2 {offsets = [0, 2], sizes = [2, 1], strides = [1, 1]} : vector<2x4xf32> to vector<2x1xf32>
    %46 = arith.subf %44, %45 : vector<2x1xf32>
    %47 = arith.mulf %46, %46 : vector<2x1xf32>
    %cst_14 = arith.constant 0.000000e+00 : f32
    %48 = vector.broadcast %cst_14 : f32 to vector<2x1xf32>
    %49 = arith.select %12, %47, %48 : vector<2x1xi1>, vector<2x1xf32>
    %50 = vector.shape_cast %49 : vector<2x1xf32> to vector<1x2x1xf32>
    %cst_15 = arith.constant dense<0.000000e+00> : vector<1xf32>
    %51 = vector.multi_reduction <add>, %50, %cst_15 [1, 2] : vector<1x2x1xf32> to vector<1xf32>
    %52 = vector.shape_cast %51 : vector<1xf32> to vector<1x1x1xf32>
    %53 = vector.extract %52[0, 0, 0] : f32 from vector<1x1x1xf32>
    %54 = arith.addf %40, %53 : f32
    %55 = vector.extract_strided_slice %6 {offsets = [0, 96], sizes = [2, 32], strides = [1, 1]} : vector<2x128xf32> to vector<2x32xf32>
    %cst_16 = arith.constant dense<0.000000e+00> : vector<2xf32>
    %56 = vector.multi_reduction <add>, %55, %cst_16 [1] : vector<2x32xf32> to vector<2xf32>
    %57 = vector.shape_cast %56 : vector<2xf32> to vector<2x1xf32>
    %58 = math.sqrt %57 : vector<2x1xf32>
    %59 = vector.extract_strided_slice %2 {offsets = [0, 3], sizes = [2, 1], strides = [1, 1]} : vector<2x4xf32> to vector<2x1xf32>
    %60 = arith.subf %58, %59 : vector<2x1xf32>
    %61 = arith.mulf %60, %60 : vector<2x1xf32>
    %cst_17 = arith.constant 0.000000e+00 : f32
    %62 = vector.broadcast %cst_17 : f32 to vector<2x1xf32>
    %63 = arith.select %12, %61, %62 : vector<2x1xi1>, vector<2x1xf32>
    %64 = vector.shape_cast %63 : vector<2x1xf32> to vector<1x2x1xf32>
    %cst_18 = arith.constant dense<0.000000e+00> : vector<1xf32>
    %65 = vector.multi_reduction <add>, %64, %cst_18 [1, 2] : vector<1x2x1xf32> to vector<1xf32>
    %66 = vector.shape_cast %65 : vector<1xf32> to vector<1x1x1xf32>
    %67 = vector.extract %66[0, 0, 0] : f32 from vector<1x1x1xf32>
    %68 = arith.addf %54, %67 : f32
    %69 = vector.broadcast %68 : f32 to vector<1x8x128xf32>
    %c0_19 = arith.constant 0 : index
    %c0_20 = arith.constant 0 : index
    %c0_21 = arith.constant 0 : index
    %70 = vector.load %arg4[%c0_19, %c0_20, %c0_21] : memref<1x8x128xf32, #tpu.memory_space<vmem>>, vector<1x8x128xf32>
    tpu.vector_store %arg4[%c0_19, %c0_20, %c0_21], %69 {strides = array<i32>} : memref<1x8x128xf32, #tpu.memory_space<vmem>>, vector<1x8x128xf32>,
    return
  }
  func.func @transform_0(%arg0: i32) -> (i32, i32) {
    %c0_i32 = arith.constant 0 : i32
    %c0_i32_0 = arith.constant 0 : i32
    return %arg0, %c0_i32 : i32, i32
  }
  func.func @transform_1(%arg0: i32) -> (i32, i32) {
    %c0_i32 = arith.constant 0 : i32
    %c0_i32_0 = arith.constant 0 : i32
    return %arg0, %c0_i32 : i32, i32
  }
  func.func @transform_2(%arg0: i32) -> (i32, i32) {
    %c0_i32 = arith.constant 0 : i32
    %c0_i32_0 = arith.constant 0 : i32
    return %arg0, %c0_i32 : i32, i32
  }
  func.func @transform_3(%arg0: i32) -> (i32, i32, i32) {
    %c0_i32 = arith.constant 0 : i32
    %c0_i32_0 = arith.constant 0 : i32
    %c0_i32_1 = arith.constant 0 : i32
    return %arg0, %c0_i32, %c0_i32_0 : i32, i32, i32
  }
}

</mosaic_0001>

<llo_original>
// kernel: tpu_custom_call.1
$region0: #{tpu_custom_call.1}
  #allocation0 [shape = 'u32[]', space=smem, size = 0x4, offset = 0x4, fixed_abs, tag = 'smem constant byte address 0x4 - core index']
  #allocation1 [shape = 'u32[144,128]{1,0:T(1,128)}', space=vmem, size = 0x12000, scoped, tag = 'internal scratch']
  %s0 = inlined_call_operand.hbm [shape: f32[2,128], index: 0, kind: input, shape index: {}]
  %s1 = inlined_call_operand.vmem [shape: f32[2,128], index: 1, kind: input, shape index: {}]
  %s2 = inlined_call_operand.vmem [shape: f32[2,4], index: 2, kind: input, shape index: {}]
  %s3 = inlined_call_operand.hbm [shape: f32[1,8,128], index: 3, kind: output, shape index: {}]
  %s4 = sld [smem:[#allocation0]]
  $region26: #{tpu_custom_call.1} parent=0
    _
  %s6 = ssub.s32 1, %s4
  %s7 = scalar_select 0, %s6, %s4
  $region1: #{tpu_custom_call.1} parent=0
    #allocation2 [shape = 'u8[1024]{0}', space=vmem, size = 0x400, scoped, tag = 'input window, operand 0, single buffered']
    #allocation3 [shape = 's32[1]{0}', space=sflag, size = 0x4, scoped, tag = 'scoped memory for tpu_custom_call.1']
    #allocation4 [shape = 's32[1]{0}', space=sflag, size = 0x4, scoped, tag = 'scoped memory for tpu_custom_call.1']
    #allocation5 [shape = 'u8[4096]{0}', space=vmem, size = 0x1000, scoped, tag = 'output window, operand 0, single buffered']
    %8 = vsyncpa [#allocation3], 0
    %9 = vsyncpa [#allocation4], 0
    // Predicated region
    $region2: #{tpu_custom_call.1} parent=1 // pred_check
      _
    $region3: #{tpu_custom_call.1} parent=1 // pred_check_branch
      %11 = sbr.rel (0) target = $region5
    $region4: #{tpu_custom_call.1} parent=1 // pred_region
      %s13 = ssub.s32 32, 32
      %14 = vsyncadd [#allocation3], %s13
      %s16 = sshll.u32 [#allocation2], 4
      %s17 = int_to_ptr.vmem [resolvable:$true] %s16
      %19 = dma.hbm_to_vmem [thread:$0]  %s0, 32, %s17, [#allocation3]
    $region5: #{tpu_custom_call.1} parent=1 // pred_fallthru
      _
    // Predicated region
    $region6: #{tpu_custom_call.1} parent=1 // pred_check
      _
    $region7: #{tpu_custom_call.1} parent=1 // pred_check_branch
      %21 = sbr.rel (0) target = $region9
    $region8: #{tpu_custom_call.1} parent=1 // pred_region
      _
    $region9: #{tpu_custom_call.1} parent=1 // pred_fallthru
      _
    // Predicated region
    $region10: #{tpu_custom_call.1} parent=1 // pred_check
      _
    $region11: #{tpu_custom_call.1} parent=1 // pred_check_branch
      %23 = sbr.rel (0) target = $region13
    $region12: #{tpu_custom_call.1} parent=1 // pred_region
      _
    $region13: #{tpu_custom_call.1} parent=1 // pred_fallthru
      _
    // Predicated region
    $region14: #{tpu_custom_call.1} parent=1 // pred_check
      _
    $region15: #{tpu_custom_call.1} parent=1 // pred_check_branch
      %25 = sbr.rel (0) target = $region17
    $region16: #{tpu_custom_call.1} parent=1 // pred_region
      %26 = dma.done [#allocation3], 32
    $region17: #{tpu_custom_call.1} parent=1 // pred_fallthru
      _
    %v27 = vld [vmem:[#allocation2] sm:$0x3]
    %v28 = vld [vmem:[%s1] sm:$0x3]
    %v29 = vld [vmem:[%s2] sm:$0x3]
    %v30 = vsub.f32 %v27, %v28
    %v31 = vadd.f32 %v30, 1e-06
    %v32 = vmul.f32 %v31, %v31
    %v33 = vlaneseq
    %v34 = vshrl.u32 %v33, 7
    %s35 = smul.u32 0, 2
    %v36 = vstv %s35
    %v37 = vadd.s32 %v34, %v36
    %vm38 = vcmp.lt.s32.totalorder %v37, 2
    %vm39 = vcmask 254976
    %v40 = vsel %vm39, %v32, 0.0
    %41 = vadd.xlane.f32.xlu0 %v40
    %v42 = vpop.xlane.xlu0 %41
    %v43 = vrsqrt.pop %v42
    %v44 = vmul.f32 %v42, %v43
    %vm45 = vcmp.eq.f32.partialorder %v42, inf
    %v46 = vsel %vm45, %v42, %v44
    %vm47 = vcmp.eq.f32.partialorder %v42, 0.0
    %v48 = vand.u32 %v42, 2147483648
    %v49 = vsel %vm47, %v48, %v46
    %v50 = vsub.f32 %v49, %v29
    %v51 = vmul.f32 %v50, %v50
    %v52 = vsel %vm38, %v51, 0.0
    %vm53 = vcmask 1024
    %v54 = vsel %vm53, %v52, 0.0
    %55 = vadd.xlane.f32.xlu0 %v54
    %v56 = vpop.xlane.xlu0 %55
    %v57 = vrot.slane %v56, 4
    %v58 = vadd.f32 %v56, %v57
    %v59 = vrot.slane %v58, 2
    %v60 = vadd.f32 %v58, %v59
    %v61 = vrot.slane %v60, 1
    %v62 = vadd.f32 %v60, %v61
    %s63 = vtos %v62
    %s64 = sadd.f32 %s63, 0.0
    %66 = vrot.lane.b32.xlu0 %v32, 96
    %v67 = vpop.permute.xlu0 %66
    %v69 = vsel %vm39, %v67, 0.0
    %70 = vadd.xlane.f32.xlu0 %v69
    %v71 = vpop.xlane.xlu0 %70
    %v72 = vrsqrt.pop %v71
    %v73 = vmul.f32 %v71, %v72
    %vm74 = vcmp.eq.f32.partialorder %v71, inf
    %v75 = vsel %vm74, %v71, %v73
    %vm76 = vcmp.eq.f32.partialorder %v71, 0.0
    %v77 = vand.u32 %v71, 2147483648
    %v78 = vsel %vm76, %v77, %v75
    %v79 = vsub.f32 %v78, %v29
    %v80 = vmul.f32 %v79, %v79
    %v81 = vsel %vm38, %v80, 0.0
    %83 = vrot.lane.b32.xlu0 %v81, 127
    %v84 = vpop.permute.xlu0 %83
    %v86 = vsel %vm53, %v84, 0.0
    %87 = vadd.xlane.f32.xlu0 %v86
    %v88 = vpop.xlane.xlu0 %87
    %v89 = vrot.slane %v88, 4
    %v90 = vadd.f32 %v88, %v89
    %v91 = vrot.slane %v90, 2
    %v92 = vadd.f32 %v90, %v91
    %v93 = vrot.slane %v92, 1
    %v94 = vadd.f32 %v92, %v93
    %s95 = vtos %v94
    %s96 = sadd.f32 %s64, %s95
    %97 = vrot.lane.b32.xlu0 %v32, 64
    %v98 = vpop.permute.xlu0 %97
    %v100 = vsel %vm39, %v98, 0.0
    %101 = vadd.xlane.f32.xlu0 %v100
    %v102 = vpop.xlane.xlu0 %101
    %v103 = vrsqrt.pop %v102
    %v104 = vmul.f32 %v102, %v103
    %vm105 = vcmp.eq.f32.partialorder %v102, inf
    %v106 = vsel %vm105, %v102, %v104
    %vm107 = vcmp.eq.f32.partialorder %v102, 0.0
    %v108 = vand.u32 %v102, 2147483648
    %v109 = vsel %vm107, %v108, %v106
    %v110 = vsub.f32 %v109, %v29
    %v111 = vmul.f32 %v110, %v110
    %v112 = vsel %vm38, %v111, 0.0
    %114 = vrot.lane.b32.xlu0 %v112, 126
    %v115 = vpop.permute.xlu0 %114
    %v117 = vsel %vm53, %v115, 0.0
    %118 = vadd.xlane.f32.xlu0 %v117
    %v119 = vpop.xlane.xlu0 %118
    %v120 = vrot.slane %v119, 4
    %v121 = vadd.f32 %v119, %v120
    %v122 = vrot.slane %v121, 2
    %v123 = vadd.f32 %v121, %v122
    %v124 = vrot.slane %v123, 1
    %v125 = vadd.f32 %v123, %v124
    %s126 = vtos %v125
    %s127 = sadd.f32 %s96, %s126
    %128 = vrot.lane.b32.xlu0 %v32, 32
    %v129 = vpop.permute.xlu0 %128
    %v131 = vsel %vm39, %v129, 0.0
    %132 = vadd.xlane.f32.xlu0 %v131
    %v133 = vpop.xlane.xlu0 %132
    %v134 = vrsqrt.pop %v133
    %v135 = vmul.f32 %v133, %v134
    %vm136 = vcmp.eq.f32.partialorder %v133, inf
    %v137 = vsel %vm136, %v133, %v135
    %vm138 = vcmp.eq.f32.partialorder %v133, 0.0
    %v139 = vand.u32 %v133, 2147483648
    %v140 = vsel %vm138, %v139, %v137
    %v141 = vsub.f32 %v140, %v29
    %v142 = vmul.f32 %v141, %v141
    %v143 = vsel %vm38, %v142, 0.0
    %145 = vrot.lane.b32.xlu0 %v143, 125
    %v146 = vpop.permute.xlu0 %145
    %v148 = vsel %vm53, %v146, 0.0
    %149 = vadd.xlane.f32.xlu0 %v148
    %v150 = vpop.xlane.xlu0 %149
    %v151 = vrot.slane %v150, 4
    %v152 = vadd.f32 %v150, %v151
    %v153 = vrot.slane %v152, 2
    %v154 = vadd.f32 %v152, %v153
    %v155 = vrot.slane %v154, 1
    %v156 = vadd.f32 %v154, %v155
    %s157 = vtos %v156
    %s158 = sadd.f32 %s127, %s157
    %v159 = vstv %s158
    %160 = vst [vmem:[#allocation5] sm:$0xff] %v159
    // Predicated region
    $region18: #{tpu_custom_call.1} parent=1 // pred_check
      _
    $region19: #{tpu_custom_call.1} parent=1 // pred_check_branch
      %162 = sbr.rel (0) target = $region21
    $region20: #{tpu_custom_call.1} parent=1 // pred_region
      %s164 = ssub.s32 128, 128
      %165 = vsyncadd [#allocation4], %s164
      %s167 = sshll.u32 [#allocation5], 4
      %s168 = int_to_ptr.vmem [resolvable:$true] %s167
      %170 = dma.vmem_to_hbm [thread:$0]  %s168, 128, %s3, [#allocation4]
    $region21: #{tpu_custom_call.1} parent=1 // pred_fallthru
      _
    // Predicated region
    $region22: #{tpu_custom_call.1} parent=1 // pred_check
      _
    $region23: #{tpu_custom_call.1} parent=1 // pred_check_branch
      %172 = sbr.rel (0) target = $region25
    $region24: #{tpu_custom_call.1} parent=1 // pred_region
      %173 = dma.done [#allocation4], 128
    $region25: #{tpu_custom_call.1} parent=1 // pred_fallthru
      _
    %174 = vsyncpa [#allocation3], 1
    %175 = vsyncpa [#allocation4], 1

</llo_original>
